<compile_context>
chip_gen: v7x
topology: tpu7x:2x2x1
jax: 0.10.0
libtpu: 0.0.40
codegen_flags: <defaults>
</compile_context>

<pallas_src>
import functools

import numpy as np
import jax
import jax.numpy as jnp
from jax import lax
from jax.experimental import pallas as pl
from jax.experimental.pallas import tpu as pltpu

NEG = -1e30   # finite stand-in for -inf (avoids NaNs in exp/log and selects)
NP = 8        # batch elements packed per grid step (one sublane group)


def _round_up(x, m):
    return (x + m - 1) // m * m


def _make_kernel(blank_logprob):
    blank_lp = float(blank_logprob)

    def kernel(key_lens_ref, query_lens_ref, lp_ref, loss_ref):
        Tq, _, W = lp_ref.shape                  # block is (Tq, NP, W), W multiple of 128
        g = pl.program_id(0)
        base = g * NP

        # grid-/loop-invariant iotas (hoisted)
        col = lax.broadcasted_iota(jnp.int32, (NP, W), 1)
        subl = lax.broadcasted_iota(jnp.int32, (NP, 1), 0)

        # per-packed-element lengths from SMEM (scalar prefetch)
        K_vec = jnp.zeros((NP, 1), jnp.int32)    # valid key (text) tokens
        T_vec = jnp.zeros((NP, 1), jnp.int32)    # valid query (mel) frames
        t_max = jnp.int32(1)
        for p in range(NP):                      # static 8-way unroll, scalar SMEM reads
            K = key_lens_ref[base + p]
            T = query_lens_ref[base + p]
            K_vec = jnp.where(subl == p, K, K_vec)
            T_vec = jnp.where(subl == p, T, T_vec)
            t_max = jnp.maximum(t_max, T)
        t_max = jnp.minimum(t_max, Tq)           # never read past the block

        valid_col = col < K_vec                  # (NP, W) valid label columns per element

        def norm_row(t):
            # masked log-softmax over {blank} U labels[0..K-1] for frame t, all NP elements
            lp = lp_ref[t].astype(jnp.float32)                     # (NP, W)
            lpm = jnp.where(valid_col, lp, NEG)
            m = jnp.maximum(jnp.max(lpm, axis=1, keepdims=True), blank_lp)   # (NP, 1)
            denom = (jnp.sum(jnp.exp(lpm - m), axis=1, keepdims=True)
                     + jnp.exp(blank_lp - m))
            lse = m + jnp.log(denom)                               # (NP, 1)
            lp_lab = jnp.where(valid_col, lp - lse, NEG)           # labels 1..K at cols 0..K-1
            lp_blank = blank_lp - lse                              # (NP, 1)
            return lp_lab, lp_blank

        def lse2(a, b):
            mx = jnp.maximum(a, b)
            return mx + jnp.log(jnp.exp(a - mx) + jnp.exp(b - mx))

        def lse3(a, b, c):
            mx = jnp.maximum(jnp.maximum(a, b), c)
            return mx + jnp.log(jnp.exp(a - mx) + jnp.exp(b - mx) + jnp.exp(c - mx))

        neg_col = jnp.full((NP, 1), NEG, jnp.float32)

        def shift_right(x):
            # x[:, j-1] with NEG fill in column 0 (kills alpha_l[-1])
            return jnp.concatenate([neg_col, x[:, :W - 1]], axis=1)

        # ---------------- init (t = 0) ----------------
        # alpha_b[:, j] = ext. position 2j   (blank after label j), j = 0..K
        # alpha_l[:, j] = ext. position 2j+1 (label j+1),           j = 0..K-1
        lab0, blank0 = norm_row(0)
        col_is0 = col == 0
        alpha_b0 = jnp.where(col_is0, blank0, NEG)                 # ext pos 0
        alpha_l0 = jnp.where(col_is0, lab0, NEG)                   # ext pos 1 (label 1)

        # ---------------- CTC alpha recursion ----------------
        def body(t, carry):
            alpha_b, alpha_l = carry
            lp_lab, lp_blank = norm_row(t)
            al_prev = shift_right(alpha_l)                         # alpha_l[j-1]
            new_b = lse2(alpha_b, al_prev) + lp_blank
            new_l = lse3(alpha_l, alpha_b, al_prev) + lp_lab       # labels 1..K are distinct
            active = t < T_vec                                     # per-element time mask
            alpha_b = jnp.where(active, new_b, alpha_b)
            alpha_l = jnp.where(active, new_l, alpha_l)
            return alpha_b, alpha_l

        alpha_b, alpha_l = lax.fori_loop(1, t_max, body, (alpha_b0, alpha_l0))

        # ------------- finalize: loss = -logsumexp(alpha_b[K], alpha_l[K-1]) / K -------------
        end_b = jnp.max(jnp.where(col == K_vec, alpha_b, NEG), axis=1, keepdims=True)
        end_l = jnp.max(jnp.where(col == K_vec - 1, alpha_l, NEG), axis=1, keepdims=True)
        ll = lse2(end_b, end_l)                                    # (NP, 1)
        k_f = jnp.maximum(K_vec, 1).astype(jnp.float32)
        loss = -ll / k_f
        # zero_infinity=True: gate on the log-likelihood itself (infeasible path => ~NEG)
        loss = jnp.where(ll > NEG * 0.5, loss, 0.0)
        loss_ref[...] = jnp.broadcast_to(loss, (NP, 128))          # lane-dense store

    return kernel


@functools.partial(jax.jit, static_argnames=("blank_logprob",))
def forward_sum_loss(attn_logprob, in_lens, out_lens, blank_logprob=-1.0):
    """JAX/Pallas equivalent of the PyTorch ForwardSumLoss.forward."""
    B, C, Tq, Tk = attn_logprob.shape
    assert C == 1
    Bp = _round_up(max(B, NP), NP)          # pad batch to a multiple of the pack size
    W = _round_up(Tk + 1, 128)              # lane width of the recursion state

    in_lens = in_lens.astype(jnp.int32)
    out_lens = out_lens.astype(jnp.int32)

    # (B, 1, Tq, Tk) -> time-major (Tq, Bp, W): the recursion then reads lp_ref[t] as a
    # dense (NP, W) tile.  Lane padding is masked in-kernel by the per-element key length.
    lp = jnp.transpose(attn_logprob[:, 0, :, :], (1, 0, 2))
    lp = jnp.pad(lp, ((0, 0), (0, Bp - B), (0, W - Tk)))
    if Bp != B:
        in_lens = jnp.pad(in_lens, (0, Bp - B), constant_values=1)
        out_lens = jnp.pad(out_lens, (0, Bp - B), constant_values=1)

    # VMEM audit: double-buffered (Tq, NP, W) input block + (NP, 128) output block.
    est = 2 * Tq * NP * W * lp.dtype.itemsize + 2 * NP * 128 * 4
    vmem_limit = min(max(2 * est + (1 << 20), 16 << 20), 60 << 20)

    kernel = _make_kernel(float(blank_logprob))
    losses = pl.pallas_call(
        kernel,
        out_shape=jax.ShapeDtypeStruct((Bp, 128), jnp.float32),
        grid_spec=pltpu.PrefetchScalarGridSpec(
            num_scalar_prefetch=2,                    # in_lens, out_lens live in SMEM
            grid=(Bp // NP,),
            in_specs=[pl.BlockSpec((Tq, NP, W), lambda g, kl, ql: (0, g, 0))],
            out_specs=pl.BlockSpec((NP, 128), lambda g, kl, ql: (g, 0)),
        ),
        compiler_params=pltpu.CompilerParams(
            dimension_semantics=("parallel",),        # batch packs are independent
            vmem_limit_bytes=vmem_limit,
        ),
    )(in_lens, out_lens, lp)

    return jnp.mean(losses[:B, 0])


# ----------------------- pure numpy reference (for verification) -----------------------
def _ref_forward_sum(attn, in_lens, out_lens, blank_logprob):
    def lsexp_rows(x):
        m = np.max(x, axis=1, keepdims=True)
        return m + np.log(np.sum(np.exp(x - m), axis=1, keepdims=True))

    B = attn.shape[0]
    total = 0.0
    for bid in range(B):
        K = int(in_lens[bid]); T = int(out_lens[bid])
        lp = attn[bid, 0, :T, :K].astype(np.float64)
        lp = np.concatenate([np.full((T, 1), blank_logprob), lp], axis=1)
        lp = lp - lsexp_rows(lp)
        S = 2 * K + 1
        labels = [0 if s % 2 == 0 else (s + 1) // 2 for s in range(S)]
        alpha = np.full(S, -np.inf)
        alpha[0] = lp[0, 0]
        alpha[1] = lp[0, labels[1]]
        for t in range(1, T):
            new = np.full(S, -np.inf)
            for s in range(S):
                cands = [alpha[s]]
                if s >= 1:
                    cands.append(alpha[s - 1])
                if s >= 2 and s % 2 == 1:
                    cands.append(alpha[s - 2])
                mx = max(cands)
                if mx == -np.inf:
                    val = -np.inf
                else:
                    val = mx + np.log(sum(np.exp(c - mx) for c in cands))
                new[s] = val + lp[t, labels[s]]
            alpha = new
        mx = max(alpha[S - 1], alpha[S - 2])
        ll = mx + np.log(np.exp(alpha[S - 1] - mx) + np.exp(alpha[S - 2] - mx))
        loss = -ll / K
        if not np.isfinite(loss):
            loss = 0.0
        total += loss
    return total / B


if __name__ == "__main__":
    key = jax.random.PRNGKey(0)
    B, Tq, Tk = 2, 16, 8
    attn_logprob = jax.random.normal(key, (B, 1, Tq, Tk), dtype=jnp.float32)
    in_lens = jnp.array([8, 6], dtype=jnp.int32)     # key (text) lengths
    out_lens = jnp.array([16, 12], dtype=jnp.int32)  # query (mel) lengths

    loss = forward_sum_loss(attn_logprob, in_lens, out_lens, blank_logprob=-1.0)
    loss = jax.block_until_ready(loss)

    ref = _ref_forward_sum(np.asarray(attn_logprob), np.asarray(in_lens),
                           np.asarray(out_lens), -1.0)
    assert np.allclose(float(loss), ref, rtol=1e-4, atol=1e-5), (float(loss), ref)
    print("KERNEL_OK")
</pallas_src>

<mosaic_0001>
module attributes {stable_mosaic.version = 11 : i64} {
  func.func @kernel(%arg0: i32, %arg1: memref<8xi32, #tpu.memory_space<smem>>, %arg2: memref<8xi32, #tpu.memory_space<smem>>, %arg3: memref<16x8x128xf32, #tpu.memory_space<vmem>>, %arg4: memref<8x128xf32, #tpu.memory_space<vmem>>) attributes {dimension_semantics = [#tpu.dimension_semantics<parallel>], iteration_bounds = array<i64: 1>, scalar_prefetch = 2 : i64, scratch_operands = 0 : i64, tpu.core_type = #tpu.core_type<tc>, window_params = [{transform_indices = @transform_0, window_bounds = array<i64: 16, 8, 128>}, {transform_indices = @transform_1, window_bounds = array<i64: 8, 128>}]} {
    %c8_i32 = arith.constant 8 : i32
    %0 = arith.muli %arg0, %c8_i32 : i32
    %1 = tpu.iota {dimensions = array<i32: 1>} : vector<8x128xi32>
    %2 = tpu.iota {dimensions = array<i32: 0>} : vector<8x1xi32>
    %c0_i32 = arith.constant 0 : i32
    %3 = vector.broadcast %c0_i32 : i32 to vector<8x1xi32>
    %c0_i32_0 = arith.constant 0 : i32
    %4 = vector.broadcast %c0_i32_0 : i32 to vector<8x1xi32>
    %c0_i32_1 = arith.constant 0 : i32
    %5 = arith.addi %0, %c0_i32_1 : i32
    %6 = arith.index_cast %5 : i32 to index
    %7 = memref.load %arg1[%6] : memref<8xi32, #tpu.memory_space<smem>>
    %c0_i32_2 = arith.constant 0 : i32
    %8 = arith.addi %0, %c0_i32_2 : i32
    %9 = arith.index_cast %8 : i32 to index
    %10 = memref.load %arg2[%9] : memref<8xi32, #tpu.memory_space<smem>>
    %c0_i32_3 = arith.constant 0 : i32
    %11 = vector.broadcast %c0_i32_3 : i32 to vector<8x1xi32>
    %12 = arith.cmpi eq, %2, %11 : vector<8x1xi32>
    %13 = vector.broadcast %7 : i32 to vector<8x1xi32>
    %14 = arith.select %12, %13, %3 : vector<8x1xi1>, vector<8x1xi32>
    %c0_i32_4 = arith.constant 0 : i32
    %15 = vector.broadcast %c0_i32_4 : i32 to vector<8x1xi32>
    %16 = arith.cmpi eq, %2, %15 : vector<8x1xi32>
    %17 = vector.broadcast %10 : i32 to vector<8x1xi32>
    %18 = arith.select %16, %17, %4 : vector<8x1xi1>, vector<8x1xi32>
    %c1_i32 = arith.constant 1 : i32
    %19 = arith.maxsi %c1_i32, %10 : i32
    %c1_i32_5 = arith.constant 1 : i32
    %20 = arith.addi %0, %c1_i32_5 : i32
    %21 = arith.index_cast %20 : i32 to index
    %22 = memref.load %arg1[%21] : memref<8xi32, #tpu.memory_space<smem>>
    %c1_i32_6 = arith.constant 1 : i32
    %23 = arith.addi %0, %c1_i32_6 : i32
    %24 = arith.index_cast %23 : i32 to index
    %25 = memref.load %arg2[%24] : memref<8xi32, #tpu.memory_space<smem>>
    %c1_i32_7 = arith.constant 1 : i32
    %26 = vector.broadcast %c1_i32_7 : i32 to vector<8x1xi32>
    %27 = arith.cmpi eq, %2, %26 : vector<8x1xi32>
    %28 = vector.broadcast %22 : i32 to vector<8x1xi32>
    %29 = arith.select %27, %28, %14 : vector<8x1xi1>, vector<8x1xi32>
    %c1_i32_8 = arith.constant 1 : i32
    %30 = vector.broadcast %c1_i32_8 : i32 to vector<8x1xi32>
    %31 = arith.cmpi eq, %2, %30 : vector<8x1xi32>
    %32 = vector.broadcast %25 : i32 to vector<8x1xi32>
    %33 = arith.select %31, %32, %18 : vector<8x1xi1>, vector<8x1xi32>
    %34 = arith.maxsi %19, %25 : i32
    %c2_i32 = arith.constant 2 : i32
    %35 = arith.addi %0, %c2_i32 : i32
    %36 = arith.index_cast %35 : i32 to index
    %37 = memref.load %arg1[%36] : memref<8xi32, #tpu.memory_space<smem>>
    %c2_i32_9 = arith.constant 2 : i32
    %38 = arith.addi %0, %c2_i32_9 : i32
    %39 = arith.index_cast %38 : i32 to index
    %40 = memref.load %arg2[%39] : memref<8xi32, #tpu.memory_space<smem>>
    %c2_i32_10 = arith.constant 2 : i32
    %41 = vector.broadcast %c2_i32_10 : i32 to vector<8x1xi32>
    %42 = arith.cmpi eq, %2, %41 : vector<8x1xi32>
    %43 = vector.broadcast %37 : i32 to vector<8x1xi32>
    %44 = arith.select %42, %43, %29 : vector<8x1xi1>, vector<8x1xi32>
    %c2_i32_11 = arith.constant 2 : i32
    %45 = vector.broadcast %c2_i32_11 : i32 to vector<8x1xi32>
    %46 = arith.cmpi eq, %2, %45 : vector<8x1xi32>
    %47 = vector.broadcast %40 : i32 to vector<8x1xi32>
    %48 = arith.select %46, %47, %33 : vector<8x1xi1>, vector<8x1xi32>
    %49 = arith.maxsi %34, %40 : i32
    %c3_i32 = arith.constant 3 : i32
    %50 = arith.addi %0, %c3_i32 : i32
    %51 = arith.index_cast %50 : i32 to index
    %52 = memref.load %arg1[%51] : memref<8xi32, #tpu.memory_space<smem>>
    %c3_i32_12 = arith.constant 3 : i32
    %53 = arith.addi %0, %c3_i32_12 : i32
    %54 = arith.index_cast %53 : i32 to index
    %55 = memref.load %arg2[%54] : memref<8xi32, #tpu.memory_space<smem>>
    %c3_i32_13 = arith.constant 3 : i32
    %56 = vector.broadcast %c3_i32_13 : i32 to vector<8x1xi32>
    %57 = arith.cmpi eq, %2, %56 : vector<8x1xi32>
    %58 = vector.broadcast %52 : i32 to vector<8x1xi32>
    %59 = arith.select %57, %58, %44 : vector<8x1xi1>, vector<8x1xi32>
    %c3_i32_14 = arith.constant 3 : i32
    %60 = vector.broadcast %c3_i32_14 : i32 to vector<8x1xi32>
    %61 = arith.cmpi eq, %2, %60 : vector<8x1xi32>
    %62 = vector.broadcast %55 : i32 to vector<8x1xi32>
    %63 = arith.select %61, %62, %48 : vector<8x1xi1>, vector<8x1xi32>
    %64 = arith.maxsi %49, %55 : i32
    %c4_i32 = arith.constant 4 : i32
    %65 = arith.addi %0, %c4_i32 : i32
    %66 = arith.index_cast %65 : i32 to index
    %67 = memref.load %arg1[%66] : memref<8xi32, #tpu.memory_space<smem>>
    %c4_i32_15 = arith.constant 4 : i32
    %68 = arith.addi %0, %c4_i32_15 : i32
    %69 = arith.index_cast %68 : i32 to index
    %70 = memref.load %arg2[%69] : memref<8xi32, #tpu.memory_space<smem>>
    %c4_i32_16 = arith.constant 4 : i32
    %71 = vector.broadcast %c4_i32_16 : i32 to vector<8x1xi32>
    %72 = arith.cmpi eq, %2, %71 : vector<8x1xi32>
    %73 = vector.broadcast %67 : i32 to vector<8x1xi32>
    %74 = arith.select %72, %73, %59 : vector<8x1xi1>, vector<8x1xi32>
    %c4_i32_17 = arith.constant 4 : i32
    %75 = vector.broadcast %c4_i32_17 : i32 to vector<8x1xi32>
    %76 = arith.cmpi eq, %2, %75 : vector<8x1xi32>
    %77 = vector.broadcast %70 : i32 to vector<8x1xi32>
    %78 = arith.select %76, %77, %63 : vector<8x1xi1>, vector<8x1xi32>
    %79 = arith.maxsi %64, %70 : i32
    %c5_i32 = arith.constant 5 : i32
    %80 = arith.addi %0, %c5_i32 : i32
    %81 = arith.index_cast %80 : i32 to index
    %82 = memref.load %arg1[%81] : memref<8xi32, #tpu.memory_space<smem>>
    %c5_i32_18 = arith.constant 5 : i32
    %83 = arith.addi %0, %c5_i32_18 : i32
    %84 = arith.index_cast %83 : i32 to index
    %85 = memref.load %arg2[%84] : memref<8xi32, #tpu.memory_space<smem>>
    %c5_i32_19 = arith.constant 5 : i32
    %86 = vector.broadcast %c5_i32_19 : i32 to vector<8x1xi32>
    %87 = arith.cmpi eq, %2, %86 : vector<8x1xi32>
    %88 = vector.broadcast %82 : i32 to vector<8x1xi32>
    %89 = arith.select %87, %88, %74 : vector<8x1xi1>, vector<8x1xi32>
    %c5_i32_20 = arith.constant 5 : i32
    %90 = vector.broadcast %c5_i32_20 : i32 to vector<8x1xi32>
    %91 = arith.cmpi eq, %2, %90 : vector<8x1xi32>
    %92 = vector.broadcast %85 : i32 to vector<8x1xi32>
    %93 = arith.select %91, %92, %78 : vector<8x1xi1>, vector<8x1xi32>
    %94 = arith.maxsi %79, %85 : i32
    %c6_i32 = arith.constant 6 : i32
    %95 = arith.addi %0, %c6_i32 : i32
    %96 = arith.index_cast %95 : i32 to index
    %97 = memref.load %arg1[%96] : memref<8xi32, #tpu.memory_space<smem>>
    %c6_i32_21 = arith.constant 6 : i32
    %98 = arith.addi %0, %c6_i32_21 : i32
    %99 = arith.index_cast %98 : i32 to index
    %100 = memref.load %arg2[%99] : memref<8xi32, #tpu.memory_space<smem>>
    %c6_i32_22 = arith.constant 6 : i32
    %101 = vector.broadcast %c6_i32_22 : i32 to vector<8x1xi32>
    %102 = arith.cmpi eq, %2, %101 : vector<8x1xi32>
    %103 = vector.broadcast %97 : i32 to vector<8x1xi32>
    %104 = arith.select %102, %103, %89 : vector<8x1xi1>, vector<8x1xi32>
    %c6_i32_23 = arith.constant 6 : i32
    %105 = vector.broadcast %c6_i32_23 : i32 to vector<8x1xi32>
    %106 = arith.cmpi eq, %2, %105 : vector<8x1xi32>
    %107 = vector.broadcast %100 : i32 to vector<8x1xi32>
    %108 = arith.select %106, %107, %93 : vector<8x1xi1>, vector<8x1xi32>
    %109 = arith.maxsi %94, %100 : i32
    %c7_i32 = arith.constant 7 : i32
    %110 = arith.addi %0, %c7_i32 : i32
    %111 = arith.index_cast %110 : i32 to index
    %112 = memref.load %arg1[%111] : memref<8xi32, #tpu.memory_space<smem>>
    %c7_i32_24 = arith.constant 7 : i32
    %113 = arith.addi %0, %c7_i32_24 : i32
    %114 = arith.index_cast %113 : i32 to index
    %115 = memref.load %arg2[%114] : memref<8xi32, #tpu.memory_space<smem>>
    %c7_i32_25 = arith.constant 7 : i32
    %116 = vector.broadcast %c7_i32_25 : i32 to vector<8x1xi32>
    %117 = arith.cmpi eq, %2, %116 : vector<8x1xi32>
    %118 = vector.broadcast %112 : i32 to vector<8x1xi32>
    %119 = arith.select %117, %118, %104 : vector<8x1xi1>, vector<8x1xi32>
    %c7_i32_26 = arith.constant 7 : i32
    %120 = vector.broadcast %c7_i32_26 : i32 to vector<8x1xi32>
    %121 = arith.cmpi eq, %2, %120 : vector<8x1xi32>
    %122 = vector.broadcast %115 : i32 to vector<8x1xi32>
    %123 = arith.select %121, %122, %108 : vector<8x1xi1>, vector<8x1xi32>
    %124 = arith.maxsi %109, %115 : i32
    %c16_i32 = arith.constant 16 : i32
    %125 = arith.minsi %124, %c16_i32 : i32
    %126 = vector.broadcast %119 : vector<8x1xi32> to vector<8x128xi32>
    %127 = arith.cmpi slt, %1, %126 : vector<8x128xi32>
    %cst = arith.constant -1.000000e+30 : f32
    %128 = vector.broadcast %cst : f32 to vector<8x1xf32>
    %c0 = arith.constant 0 : index
    %c0_27 = arith.constant 0 : index
    %c0_28 = arith.constant 0 : index
    %129 = vector.load %arg3[%c0, %c0_27, %c0_28] : memref<16x8x128xf32, #tpu.memory_space<vmem>>, vector<1x8x128xf32>
    %130 = vector.shape_cast %129 : vector<1x8x128xf32> to vector<8x128xf32>
    %cst_29 = arith.constant -1.000000e+30 : f32
    %131 = vector.broadcast %cst_29 : f32 to vector<8x128xf32>
    %132 = arith.select %127, %130, %131 : vector<8x128xi1>, vector<8x128xf32>
    %cst_30 = arith.constant dense<0xFF800000> : vector<8xf32>
    %133 = vector.multi_reduction <maximumf>, %132, %cst_30 [1] : vector<8x128xf32> to vector<8xf32>
    %134 = vector.shape_cast %133 : vector<8xf32> to vector<8x1xf32>
    %cst_31 = arith.constant -1.000000e+00 : f32
    %135 = vector.broadcast %cst_31 : f32 to vector<8x1xf32>
    %136 = arith.maximumf %134, %135 : vector<8x1xf32>
    %137 = vector.broadcast %136 : vector<8x1xf32> to vector<8x128xf32>
    %138 = arith.subf %132, %137 : vector<8x128xf32>
    %139 = math.exp %138 : vector<8x128xf32>
    %cst_32 = arith.constant dense<0.000000e+00> : vector<8xf32>
    %140 = vector.multi_reduction <add>, %139, %cst_32 [1] : vector<8x128xf32> to vector<8xf32>
    %141 = vector.shape_cast %140 : vector<8xf32> to vector<8x1xf32>
    %cst_33 = arith.constant -1.000000e+00 : f32
    %142 = vector.broadcast %cst_33 : f32 to vector<8x1xf32>
    %143 = arith.subf %142, %136 : vector<8x1xf32>
    %144 = math.exp %143 : vector<8x1xf32>
    %145 = arith.addf %141, %144 : vector<8x1xf32>
    %146 = math.log %145 : vector<8x1xf32>
    %147 = arith.addf %136, %146 : vector<8x1xf32>
    %148 = vector.broadcast %147 : vector<8x1xf32> to vector<8x128xf32>
    %149 = arith.subf %130, %148 : vector<8x128xf32>
    %cst_34 = arith.constant -1.000000e+30 : f32
    %150 = vector.broadcast %cst_34 : f32 to vector<8x128xf32>
    %151 = arith.select %127, %149, %150 : vector<8x128xi1>, vector<8x128xf32>
    %cst_35 = arith.constant -1.000000e+00 : f32
    %152 = vector.broadcast %cst_35 : f32 to vector<8x1xf32>
    %153 = arith.subf %152, %147 : vector<8x1xf32>
    %c0_i32_36 = arith.constant 0 : i32
    %154 = vector.broadcast %c0_i32_36 : i32 to vector<8x128xi32>
    %155 = arith.cmpi eq, %1, %154 : vector<8x128xi32>
    %cst_37 = arith.constant -1.000000e+30 : f32
    %156 = vector.shape_cast %153 : vector<8x1xf32> to vector<8x1xf32>
    %157 = vector.broadcast %156 : vector<8x1xf32> to vector<8x128xf32>
    %158 = vector.broadcast %cst_37 : f32 to vector<8x128xf32>
    %159 = arith.select %155, %157, %158 : vector<8x128xi1>, vector<8x128xf32>
    %cst_38 = arith.constant -1.000000e+30 : f32
    %160 = vector.broadcast %cst_38 : f32 to vector<8x128xf32>
    %161 = arith.select %155, %151, %160 : vector<8x128xi1>, vector<8x128xf32>
    %c1_i32_39 = arith.constant 1 : i32
    %162 = arith.subi %125, %c1_i32_39 : i32
    %163 = arith.addi %c1_i32_39, %162 : i32
    %c1_i32_40 = arith.constant 1 : i32
    %164:2 = scf.for %arg5 = %c1_i32_39 to %163 step %c1_i32_40 iter_args(%arg6 = %159, %arg7 = %161) -> (vector<8x128xf32>, vector<8x128xf32>)  : i32 {
      %200 = arith.index_cast %arg5 : i32 to index
      %c0_52 = arith.constant 0 : index
      %c0_53 = arith.constant 0 : index
      %201 = vector.load %arg3[%200, %c0_52, %c0_53] : memref<16x8x128xf32, #tpu.memory_space<vmem>>, vector<1x8x128xf32>
      %202 = vector.shape_cast %201 : vector<1x8x128xf32> to vector<8x128xf32>
      %cst_54 = arith.constant -1.000000e+30 : f32
      %203 = vector.broadcast %cst_54 : f32 to vector<8x128xf32>
      %204 = arith.select %127, %202, %203 : vector<8x128xi1>, vector<8x128xf32>
      %cst_55 = arith.constant dense<0xFF800000> : vector<8xf32>
      %205 = vector.multi_reduction <maximumf>, %204, %cst_55 [1] : vector<8x128xf32> to vector<8xf32>
      %206 = vector.shape_cast %205 : vector<8xf32> to vector<8x1xf32>
      %cst_56 = arith.constant -1.000000e+00 : f32
      %207 = vector.broadcast %cst_56 : f32 to vector<8x1xf32>
      %208 = arith.maximumf %206, %207 : vector<8x1xf32>
      %209 = vector.broadcast %208 : vector<8x1xf32> to vector<8x128xf32>
      %210 = arith.subf %204, %209 : vector<8x128xf32>
      %211 = math.exp %210 : vector<8x128xf32>
      %cst_57 = arith.constant dense<0.000000e+00> : vector<8xf32>
      %212 = vector.multi_reduction <add>, %211, %cst_57 [1] : vector<8x128xf32> to vector<8xf32>
      %213 = vector.shape_cast %212 : vector<8xf32> to vector<8x1xf32>
      %cst_58 = arith.constant -1.000000e+00 : f32
      %214 = vector.broadcast %cst_58 : f32 to vector<8x1xf32>
      %215 = arith.subf %214, %208 : vector<8x1xf32>
      %216 = math.exp %215 : vector<8x1xf32>
      %217 = arith.addf %213, %216 : vector<8x1xf32>
      %218 = math.log %217 : vector<8x1xf32>
      %219 = arith.addf %208, %218 : vector<8x1xf32>
      %220 = vector.broadcast %219 : vector<8x1xf32> to vector<8x128xf32>
      %221 = arith.subf %202, %220 : vector<8x128xf32>
      %cst_59 = arith.constant -1.000000e+30 : f32
      %222 = vector.broadcast %cst_59 : f32 to vector<8x128xf32>
      %223 = arith.select %127, %221, %222 : vector<8x128xi1>, vector<8x128xf32>
      %cst_60 = arith.constant -1.000000e+00 : f32
      %224 = vector.broadcast %cst_60 : f32 to vector<8x1xf32>
      %225 = arith.subf %224, %219 : vector<8x1xf32>
      %226 = vector.extract_strided_slice %arg7 {offsets = [0, 0], sizes = [8, 127], strides = [1, 1]} : vector<8x128xf32> to vector<8x127xf32>
      %227 = tpu.concatenate %128, %226 in 1 : vector<8x1xf32>, vector<8x127xf32> -> vector<8x128xf32>
      %228 = arith.maximumf %arg6, %227 : vector<8x128xf32>
      %229 = arith.subf %arg6, %228 : vector<8x128xf32>
      %230 = math.exp %229 : vector<8x128xf32>
      %231 = arith.subf %227, %228 : vector<8x128xf32>
      %232 = math.exp %231 : vector<8x128xf32>
      %233 = arith.addf %230, %232 : vector<8x128xf32>
      %234 = math.log %233 : vector<8x128xf32>
      %235 = arith.addf %228, %234 : vector<8x128xf32>
      %236 = vector.broadcast %225 : vector<8x1xf32> to vector<8x128xf32>
      %237 = arith.addf %235, %236 : vector<8x128xf32>
      %238 = arith.maximumf %arg7, %arg6 : vector<8x128xf32>
      %239 = arith.maximumf %238, %227 : vector<8x128xf32>
      %240 = arith.subf %arg7, %239 : vector<8x128xf32>
      %241 = math.exp %240 : vector<8x128xf32>
      %242 = arith.subf %arg6, %239 : vector<8x128xf32>
      %243 = math.exp %242 : vector<8x128xf32>
      %244 = arith.addf %241, %243 : vector<8x128xf32>
      %245 = arith.subf %227, %239 : vector<8x128xf32>
      %246 = math.exp %245 : vector<8x128xf32>
      %247 = arith.addf %244, %246 : vector<8x128xf32>
      %248 = math.log %247 : vector<8x128xf32>
      %249 = arith.addf %239, %248 : vector<8x128xf32>
      %250 = arith.addf %249, %223 : vector<8x128xf32>
      %251 = vector.broadcast %arg5 : i32 to vector<8x1xi32>
      %252 = arith.cmpi slt, %251, %123 : vector<8x1xi32>
      %253 = vector.shape_cast %252 : vector<8x1xi1> to vector<8x1xi1>
      %254 = vector.broadcast %253 : vector<8x1xi1> to vector<8x128xi1>
      %255 = arith.select %254, %237, %arg6 : vector<8x128xi1>, vector<8x128xf32>
      %256 = vector.shape_cast %252 : vector<8x1xi1> to vector<8x1xi1>
      %257 = vector.broadcast %256 : vector<8x1xi1> to vector<8x128xi1>
      %258 = arith.select %257, %250, %arg7 : vector<8x128xi1>, vector<8x128xf32>
      scf.yield %255, %258 : vector<8x128xf32>, vector<8x128xf32>
    }
    %165 = vector.broadcast %119 : vector<8x1xi32> to vector<8x128xi32>
    %166 = arith.cmpi eq, %1, %165 : vector<8x128xi32>
    %cst_41 = arith.constant -1.000000e+30 : f32
    %167 = vector.broadcast %cst_41 : f32 to vector<8x128xf32>
    %168 = arith.select %166, %164#0, %167 : vector<8x128xi1>, vector<8x128xf32>
    %cst_42 = arith.constant dense<0xFF800000> : vector<8xf32>
    %169 = vector.multi_reduction <maximumf>, %168, %cst_42 [1] : vector<8x128xf32> to vector<8xf32>
    %170 = vector.shape_cast %169 : vector<8xf32> to vector<8x1xf32>
    %c1_i32_43 = arith.constant 1 : i32
    %171 = vector.broadcast %c1_i32_43 : i32 to vector<8x1xi32>
    %172 = arith.subi %119, %171 : vector<8x1xi32>
    %173 = vector.broadcast %172 : vector<8x1xi32> to vector<8x128xi32>
    %174 = arith.cmpi eq, %1, %173 : vector<8x128xi32>
    %cst_44 = arith.constant -1.000000e+30 : f32
    %175 = vector.broadcast %cst_44 : f32 to vector<8x128xf32>
    %176 = arith.select %174, %164#1, %175 : vector<8x128xi1>, vector<8x128xf32>
    %cst_45 = arith.constant dense<0xFF800000> : vector<8xf32>
    %177 = vector.multi_reduction <maximumf>, %176, %cst_45 [1] : vector<8x128xf32> to vector<8xf32>
    %178 = vector.shape_cast %177 : vector<8xf32> to vector<8x1xf32>
    %179 = arith.maximumf %170, %178 : vector<8x1xf32>
    %180 = arith.subf %170, %179 : vector<8x1xf32>
    %181 = math.exp %180 : vector<8x1xf32>
    %182 = arith.subf %178, %179 : vector<8x1xf32>
    %183 = math.exp %182 : vector<8x1xf32>
    %184 = arith.addf %181, %183 : vector<8x1xf32>
    %185 = math.log %184 : vector<8x1xf32>
    %186 = arith.addf %179, %185 : vector<8x1xf32>
    %c1_i32_46 = arith.constant 1 : i32
    %187 = vector.broadcast %c1_i32_46 : i32 to vector<8x1xi32>
    %188 = arith.maxsi %119, %187 : vector<8x1xi32>
    %189 = arith.sitofp %188 : vector<8x1xi32> to vector<8x1xf32>
    %cst_47 = arith.constant 0.000000e+00 : f32
    %190 = vector.broadcast %cst_47 : f32 to vector<8x1xf32>
    %191 = arith.subf %190, %186 : vector<8x1xf32>
    %192 = arith.divf %191, %189 : vector<8x1xf32>
    %cst_48 = arith.constant -5.000000e+29 : f32
    %193 = vector.broadcast %cst_48 : f32 to vector<8x1xf32>
    %194 = arith.cmpf ogt, %186, %193 : vector<8x1xf32>
    %cst_49 = arith.constant 0.000000e+00 : f32
    %195 = vector.broadcast %cst_49 : f32 to vector<8x1xf32>
    %196 = arith.select %194, %192, %195 : vector<8x1xi1>, vector<8x1xf32>
    %197 = vector.shape_cast %196 : vector<8x1xf32> to vector<8x1xf32>
    %198 = vector.broadcast %197 : vector<8x1xf32> to vector<8x128xf32>
    %c0_50 = arith.constant 0 : index
    %c0_51 = arith.constant 0 : index
    %199 = vector.load %arg4[%c0_50, %c0_51] : memref<8x128xf32, #tpu.memory_space<vmem>>, vector<8x128xf32>
    tpu.vector_store %arg4[%c0_50, %c0_51], %198 {strides = array<i32>} : memref<8x128xf32, #tpu.memory_space<vmem>>, vector<8x128xf32>,
    return
  }
  func.func @transform_0(%arg0: i32, %arg1: memref<8xi32, #tpu.memory_space<smem>>, %arg2: memref<8xi32, #tpu.memory_space<smem>>) -> (i32, i32, i32) {
    %c0_i32 = arith.constant 0 : i32
    %c0_i32_0 = arith.constant 0 : i32
    %c0_i32_1 = arith.constant 0 : i32
    return %c0_i32, %arg0, %c0_i32_0 : i32, i32, i32
  }
  func.func @transform_1(%arg0: i32, %arg1: memref<8xi32, #tpu.memory_space<smem>>, %arg2: memref<8xi32, #tpu.memory_space<smem>>) -> (i32, i32) {
    %c0_i32 = arith.constant 0 : i32
    %c0_i32_0 = arith.constant 0 : i32
    return %arg0, %c0_i32 : i32, i32
  }
}

</mosaic_0001>

<llo_original>
// kernel: forward_sum_loss.1
$region0: #{forward_sum_loss.1}
  #allocation0 [shape = 'u32[]', space=smem, size = 0x4, offset = 0x4, fixed_abs, tag = 'smem constant byte address 0x4 - core index']
  #allocation1 [shape = 'u32[144,128]{1,0:T(1,128)}', space=vmem, size = 0x12000, scoped, tag = 'internal scratch']
  #allocation2 [shape = 's32[1]{0}', space=sflag, size = 0x4, scoped, tag = 'scoped memory for forward_sum_loss.1']
  #allocation3 [shape = 'u8[512]{0}', space=smem, size = 0x200, scoped, tag = 'prefetched SMEM operand 0']
  #allocation4 [shape = 'u8[512]{0}', space=smem, size = 0x200, scoped, tag = 'prefetched SMEM operand 1']
  %s0 = inlined_call_operand.vmem [shape: s32[8], index: 0, kind: input, shape index: {}]
  %s1 = inlined_call_operand.vmem [shape: s32[8], index: 1, kind: input, shape index: {}]
  %s2 = inlined_call_operand.vmem [shape: f32[16,8,128], index: 2, kind: input, shape index: {}]
  %s3 = inlined_call_operand.vmem [shape: f32[8,128], index: 3, kind: output, shape index: {}]
  %s4 = sld [smem:[#allocation0]]
  $region21: #{forward_sum_loss.1} parent=0
    _
  %s6 = ssub.s32 1, %s4
  %s7 = scalar_select 0, %s6, %s4
  %s8 = sshll.u32 %s0, 4
  %s9 = int_to_ptr.vmem [resolvable:$true] %s8
  %11 = dma.vmem_to_smem %s9, 16, [#allocation3], [#allocation2]
  %s12 = sshll.u32 %s1, 4
  %s13 = int_to_ptr.vmem [resolvable:$true] %s12
  %15 = dma.vmem_to_smem %s13, 16, [#allocation4], [#allocation2]
  %16 = dma.done [#allocation2], 32
  %17 = sfence
  // Predicated region
  $region2: #{forward_sum_loss.1} parent=0 // pred_check
    _
  $region3: #{forward_sum_loss.1} parent=0 // pred_check_branch
    %19 = sbr.rel (0) target = $region5
  $region4: #{forward_sum_loss.1} parent=0 // pred_region
    _
  $region5: #{forward_sum_loss.1} parent=0 // pred_fallthru
    _
  %s20 = smul.u32 0, 8
  %v21 = vlaneseq
  %v22 = vand.u32 %v21, 127
  %v23 = vlaneseq
  %v24 = vshrl.u32 %v23, 7
  %s25 = sld [smem:[#allocation3 + %s20]]
  %s26 = sld [smem:[#allocation4 + %s20]]
  %vm27 = vcmp.eq.s32.totalorder %v24, 0
  %v28 = vstv %s25
  %v29 = vsel %vm27, %v28, 0
  %v30 = vstv %s26
  %v31 = vsel %vm27, %v30, 0
  %p32 = scmp.gt.s32.totalorder %s26, 1
  %s33 = scalar_select %p32, %s26, 1
  %s34 = sadd.s32 %s20, 1
  %s35 = sld [smem:[#allocation3 + %s34]]
  %s36 = sld [smem:[#allocation4 + %s34]]
  %vm37 = vcmp.eq.s32.totalorder %v24, 1
  %v38 = vstv %s35
  %v39 = vsel %vm37, %v38, %v29
  %v40 = vstv %s36
  %v41 = vsel %vm37, %v40, %v31
  %p42 = scmp.gt.s32.totalorder %s33, %s36
  %s43 = scalar_select %p42, %s33, %s36
  %s44 = sadd.s32 %s20, 2
  %s45 = sld [smem:[#allocation3 + %s44]]
  %s46 = sld [smem:[#allocation4 + %s44]]
  %vm47 = vcmp.eq.s32.totalorder %v24, 2
  %v48 = vstv %s45
  %v49 = vsel %vm47, %v48, %v39
  %v50 = vstv %s46
  %v51 = vsel %vm47, %v50, %v41
  %p52 = scmp.gt.s32.totalorder %s43, %s46
  %s53 = scalar_select %p52, %s43, %s46
  %s54 = sadd.s32 %s20, 3
  %s55 = sld [smem:[#allocation3 + %s54]]
  %s56 = sld [smem:[#allocation4 + %s54]]
  %vm57 = vcmp.eq.s32.totalorder %v24, 3
  %v58 = vstv %s55
  %v59 = vsel %vm57, %v58, %v49
  %v60 = vstv %s56
  %v61 = vsel %vm57, %v60, %v51
  %p62 = scmp.gt.s32.totalorder %s53, %s56
  %s63 = scalar_select %p62, %s53, %s56
  %s64 = sadd.s32 %s20, 4
  %s65 = sld [smem:[#allocation3 + %s64]]
  %s66 = sld [smem:[#allocation4 + %s64]]
  %vm67 = vcmp.eq.s32.totalorder %v24, 4
  %v68 = vstv %s65
  %v69 = vsel %vm67, %v68, %v59
  %v70 = vstv %s66
  %v71 = vsel %vm67, %v70, %v61
  %p72 = scmp.gt.s32.totalorder %s63, %s66
  %s73 = scalar_select %p72, %s63, %s66
  %s74 = sadd.s32 %s20, 5
  %s75 = sld [smem:[#allocation3 + %s74]]
  %s76 = sld [smem:[#allocation4 + %s74]]
  %vm77 = vcmp.eq.s32.totalorder %v24, 5
  %v78 = vstv %s75
  %v79 = vsel %vm77, %v78, %v69
  %v80 = vstv %s76
  %v81 = vsel %vm77, %v80, %v71
  %p82 = scmp.gt.s32.totalorder %s73, %s76
  %s83 = scalar_select %p82, %s73, %s76
  %s84 = sadd.s32 %s20, 6
  %s85 = sld [smem:[#allocation3 + %s84]]
  %s86 = sld [smem:[#allocation4 + %s84]]
  %vm87 = vcmp.eq.s32.totalorder %v24, 6
  %v88 = vstv %s85
  %v89 = vsel %vm87, %v88, %v79
  %v90 = vstv %s86
  %v91 = vsel %vm87, %v90, %v81
  %p92 = scmp.gt.s32.totalorder %s83, %s86
  %s93 = scalar_select %p92, %s83, %s86
  %s94 = sadd.s32 %s20, 7
  %s95 = sld [smem:[#allocation3 + %s94]]
  %s96 = sld [smem:[#allocation4 + %s94]]
  %vm97 = vcmp.eq.s32.totalorder %v24, 7
  %v98 = vstv %s95
  %v99 = vsel %vm97, %v98, %v89
  %v100 = vstv %s96
  %v101 = vsel %vm97, %v100, %v91
  %p102 = scmp.gt.s32.totalorder %s93, %s96
  %s103 = scalar_select %p102, %s93, %s96
  %p104 = scmp.lt.s32.totalorder %s103, 16
  %s105 = scalar_select %p104, %s103, 16
  %vm106 = vcmp.lt.s32.totalorder %v22, %v99
  %v107 = vld [vmem:[%s2] sm:$0xff]
  %v108 = vsel %vm106, %v107, -1e+30
  %109 = vmax.xlane.f32.xlu0 %v108
  %v110 = vpop.xlane.xlu0 %109
  %v111 = vmax.f32 %v110, -1.0
  %v112 = vsub.f32 %v108, %v111
  %v113 = vmul.f32 %v112, 1.442695
  %v114 = vpow.pop %v113
  %115 = vadd.xlane.f32.xlu0 %v114
  %v116 = vpop.xlane.xlu0 %115
  %v117 = vsub.f32 -1.0, %v111
  %v118 = vmul.f32 %v117, 1.442695
  %v119 = vpow.pop %v118
  %v120 = vadd.f32 %v116, %v119
  %v121 = vlog2.pop %v120
  %v122 = vmul.f32 %v121, 0.6931472
  %v123 = vadd.f32 %v111, %v122
  %v124 = vsub.f32 %v107, %v123
  %v125 = vsel %vm106, %v124, -1e+30
  %v126 = vsub.f32 -1.0, %v123
  %vm127 = vcmp.eq.s32.totalorder %v22, 0
  %v128 = vsel %vm127, %v126, -1e+30
  %v129 = vsel %vm127, %v125, -1e+30
  // While loop
  $region6: #{forward_sum_loss.1} parent=0 // loop_pre_header
    _
  $region7: #{forward_sum_loss.1} parent=0 // loop_header
    %s131 = sphi 1, %s133
    %p132 = scmp.ge.s32.totalorder %s131, %s105
    %v136 = vphi %v128, %v199
    %v137 = vphi %v129, %v200
  $region8: #{forward_sum_loss.1} parent=0 // loop_header_branch
    %135 = sbr.rel (%p132) target = $region12
  $region9: #{forward_sum_loss.1} parent=0 // loop_body
    %s138 = smul.u32 %s131, 8
    %s139 = scalar_lea.vmem %s2, %s138
    %v140 = vld [vmem:[%s139] sm:$0xff]
    %v141 = vsel %vm106, %v140, -1e+30
    %142 = vmax.xlane.f32.xlu0 %v141
    %v143 = vpop.xlane.xlu0 %142
    %v144 = vmax.f32 %v143, -1.0
    %v145 = vsub.f32 %v141, %v144
    %v146 = vmul.f32 %v145, 1.442695
    %v147 = vpow.pop %v146
    %148 = vadd.xlane.f32.xlu0 %v147
    %v149 = vpop.xlane.xlu0 %148
    %v150 = vsub.f32 -1.0, %v144
    %v151 = vmul.f32 %v150, 1.442695
    %v152 = vpow.pop %v151
    %v153 = vadd.f32 %v149, %v152
    %v154 = vlog2.pop %v153
    %v155 = vmul.f32 %v154, 0.6931472
    %v156 = vadd.f32 %v144, %v155
    %v157 = vsub.f32 %v140, %v156
    %v158 = vsel %vm106, %v157, -1e+30
    %v159 = vsub.f32 -1.0, %v156
    %161 = vrot.lane.b32.xlu0 %v137, 1
    %v162 = vpop.permute.xlu0 %161
    %vm164 = vcmask 7168
    %v165 = vsel %vm164, -1e+30, %v162
    %v166 = vmax.f32 %v136, %v165
    %v167 = vsub.f32 %v136, %v166
    %v168 = vmul.f32 %v167, 1.442695
    %v169 = vpow.pop %v168
    %v170 = vsub.f32 %v165, %v166
    %v171 = vmul.f32 %v170, 1.442695
    %v172 = vpow.pop %v171
    %v173 = vadd.f32 %v169, %v172
    %v174 = vlog2.pop %v173
    %v175 = vmul.f32 %v174, 0.6931472
    %v176 = vadd.f32 %v166, %v175
    %v177 = vadd.f32 %v176, %v159
    %v178 = vmax.f32 %v137, %v136
    %v179 = vmax.f32 %v178, %v165
    %v180 = vsub.f32 %v137, %v179
    %v181 = vmul.f32 %v180, 1.442695
    %v182 = vpow.pop %v181
    %v183 = vsub.f32 %v136, %v179
    %v184 = vmul.f32 %v183, 1.442695
    %v185 = vpow.pop %v184
    %v186 = vadd.f32 %v182, %v185
    %v187 = vsub.f32 %v165, %v179
    %v188 = vmul.f32 %v187, 1.442695
    %v189 = vpow.pop %v188
    %v190 = vadd.f32 %v186, %v189
    %v191 = vlog2.pop %v190
    %v192 = vmul.f32 %v191, 0.6931472
    %v193 = vadd.f32 %v179, %v192
    %v194 = vadd.f32 %v193, %v158
    %v195 = vstv %s131
    %vm196 = vcmp.lt.s32.totalorder %v195, %v101
    %v197 = vsel %vm196, 1, 0
    %vm198 = vcmp.eq.s32.totalorder %v197, 1
    %v199 = vsel %vm198, %v177, %v136
    %v200 = vsel %vm198, %v194, %v137
  $region10: #{forward_sum_loss.1} parent=0 // loop_footer
    %s133 = sadd.s32 %s131, 1
  $region11: #{forward_sum_loss.1} parent=0 // loop_footer_branch
    %130 = sbr.rel target = $region7
  $region12: #{forward_sum_loss.1} parent=0 // loop_exit
    _
  %vm201 = vcmp.eq.s32.totalorder %v22, %v99
  %v202 = vsel %vm201, %v136, -1e+30
  %203 = vmax.xlane.f32.xlu0 %v202
  %v204 = vpop.xlane.xlu0 %203
  %v205 = vsub.s32 %v99, 1
  %vm206 = vcmp.eq.s32.totalorder %v22, %v205
  %v207 = vsel %vm206, %v137, -1e+30
  %208 = vmax.xlane.f32.xlu0 %v207
  %v209 = vpop.xlane.xlu0 %208
  %v210 = vmax.f32 %v204, %v209
  %v211 = vsub.f32 %v204, %v210
  %v212 = vmul.f32 %v211, 1.442695
  %v213 = vpow.pop %v212
  %v214 = vsub.f32 %v209, %v210
  %v215 = vmul.f32 %v214, 1.442695
  %v216 = vpow.pop %v215
  %v217 = vadd.f32 %v213, %v216
  %v218 = vlog2.pop %v217
  %v219 = vmul.f32 %v218, 0.6931472
  %v220 = vadd.f32 %v210, %v219
  %vm221 = vcmp.gt.s32.totalorder %v99, 1
  %v222 = vsel %vm221, %v99, 1
  %v223 = vcvt.s32.f32 %v222
  %v224 = vsub.f32 0.0, %v220
  %v225 = vrcp.pop %v223
  %v226 = vmul.f32 %v224, %v225
  %vm227 = vcmp.gt.f32.partialorder %v220, -5e+29
  %v228 = vsel %vm227, %v226, 0.0
  %229 = vst [vmem:[%s3] sm:$0xff] %v228
  // Predicated region
  $region13: #{forward_sum_loss.1} parent=0 // pred_check
    _
  $region14: #{forward_sum_loss.1} parent=0 // pred_check_branch
    %231 = sbr.rel (0) target = $region16
  $region15: #{forward_sum_loss.1} parent=0 // pred_region
    _
  $region16: #{forward_sum_loss.1} parent=0 // pred_fallthru
    _
  // Predicated region
  $region17: #{forward_sum_loss.1} parent=0 // pred_check
    _
  $region18: #{forward_sum_loss.1} parent=0 // pred_check_branch
    %233 = sbr.rel (0) target = $region20
  $region19: #{forward_sum_loss.1} parent=0 // pred_region
    _
  $region20: #{forward_sum_loss.1} parent=0 // pred_fallthru
    _

</llo_original>
